<compile_context>
chip_gen: v7x
topology: tpu7x:2x2x1
jax: 0.10.0
libtpu: 0.0.40
codegen_flags: <defaults>
</compile_context>

<pallas_src>
import functools

import jax
import jax.numpy as jnp
from jax import lax
from jax.experimental import pallas as pl
from jax.experimental.pallas import tpu as pltpu


# ----------------------------------------------------------------------------
# Generation info (tile policy / vmem limits are generation-aware)
# ----------------------------------------------------------------------------
def _device_info():
    """Returns (vmem_capacity_bytes, tensorcores_per_device) with fallbacks."""
    kind = ""
    try:
        kind = jax.devices()[0].device_kind.lower()
    except Exception:
        pass
    if "v7" in kind:
        return 64 << 20, 2            # v7x: 64 MiB VMEM per TC, 2 TCs
    if ("v4" in kind) or ("v5p" in kind):
        return 128 << 20, 2           # megacore parts
    if ("v2" in kind) or ("v3" in kind):
        return 16 << 20, 1
    if kind:
        return 128 << 20, 1           # v5e / v6e: 128 MiB VMEM, single TC
    return 64 << 20, 2                # unknown: conservative VMEM, assume 2 TCs


# ----------------------------------------------------------------------------
# Kernel
# ----------------------------------------------------------------------------
def _powernorm_kernel(*refs, gs_eps, inv_n, n_rows, tile_rows, n_inner,
                      mask_rows, n_groups, compute_y, compute_var):
    """Fused GroupScaling1D + PowerNorm tile kernel.

    Ref order (inputs then outputs; optional refs controlled by static flags):
      x (TN, TC), gsum (TC, G) bf16 [, gbcast (G, TC) f32]
      [, scale (1, TC) f32, bias (1, TC) f32]
      [, y (TN, TC)] [, var_partial (1, TC) f32]
    """
    refs = list(refs)
    x_ref = refs.pop(0)
    gsum_ref = refs.pop(0)
    gbc_ref = refs.pop(0) if n_groups > 1 else None
    scale_ref = refs.pop(0) if compute_y else None
    bias_ref = refs.pop(0) if compute_y else None
    y_ref = refs.pop(0) if compute_y else None
    var_ref = refs.pop(0) if compute_var else None

    ro = pl.program_id(0)            # outer row block (parallel)
    ri = pl.program_id(2)            # inner row block (accumulation axis)

    xf = x_ref[...].astype(jnp.float32)                       # (TN, TC)

    # --- GroupScaling1D: per-row second moment within each channel group ----
    # Thin bf16 reduce on the MXU (native dtype, single pass); rsqrt runs on
    # the small (TN, G) tensor only (cg x fewer EUP ops than a full tile).
    x2b = (xf * xf).astype(jnp.bfloat16)
    gm = jnp.dot(x2b, gsum_ref[...], preferred_element_type=jnp.float32)
    inv = lax.rsqrt(gm + gs_eps)                               # (TN, G)
    if n_groups > 1:
        # Broadcast each group's scale across its channels with a 0/1 matrix.
        # K = G is tiny so even the f32 (full-precision) matmul is hidden.
        inv = jnp.dot(inv, gbc_ref[...], preferred_element_type=jnp.float32)
    gs = xf * inv                                              # group-scaled x

    # --- Apply: y = gs * (weight * rsqrt(var_or_phi + eps)) + bias ----------
    if compute_y:
        y_ref[...] = (gs * scale_ref[...] + bias_ref[...]).astype(y_ref.dtype)

    # --- Per-channel second moment, accumulated across inner row tiles ------
    if compute_var:
        @pl.when(ri == 0)
        def _init():
            var_ref[...] = jnp.zeros_like(var_ref)

        gs2 = gs * gs
        if mask_rows:
            row = ((ro * n_inner + ri) * tile_rows
                   + lax.broadcasted_iota(jnp.int32, (tile_rows, 1), 0))
            gs2 = jnp.where(row < n_rows, gs2, 0.0)
        var_ref[...] += jnp.sum(gs2, axis=0, keepdims=True)

        @pl.when(ri == n_inner - 1)
        def _finalize():
            # Partial sums scaled by 1/N; the (tiny) cross-outer-block sum is
            # done outside the kernel so sharding `ro` across TCs is race-free.
            var_ref[...] = var_ref[...] * inv_n


# ----------------------------------------------------------------------------
# Tile selection (generation-aware)
# ----------------------------------------------------------------------------
def _choose_col_tile(C, cg, *, num_tc, vmem_bytes):
    # Channel tile must be a multiple of the group width so per-group means
    # stay tile-local.
    if num_tc <= 1:
        # Single-TC parts: full-width tiles -> contiguous DMAs, fewest grid
        # steps, params fetched once; only split when C is extremely wide.
        if C * 256 * 4 * 10 <= int(0.75 * vmem_bytes):
            return C
    # Multi-TC parts (or very wide C with groups): lane-dense, group-aligned
    # split so the channel axis can be sharded across TensorCores.
    for t in (512, 256, 128):
        if C > t and C % t == 0 and t % cg == 0:
            return t
    return C


def _choose_row_tile(N, c_tile, itemsize, *, vmem_bytes):
    sub = 8 if itemsize >= 4 else 16
    # f32 working-set budget per tile: big tiles amortize the ~0.35us grid-step
    # overhead; 128 MiB-VMEM parts (v5e/v6e) get larger tiles than v7x.
    budget = (6 << 20) if vmem_bytes >= (96 << 20) else (2 << 20)
    target = max(256, budget // (4 * c_tile))
    # Keep the total footprint (~10 f32 slabs) well under VMEM for wide C.
    slab_rows = max(sub, int(0.06 * vmem_bytes) // (4 * c_tile))
    target = min(target, slab_rows)
    target = max(sub, (target // sub) * sub)
    return int(min(N, target))


# ----------------------------------------------------------------------------
# One pallas_call pass
# ----------------------------------------------------------------------------
def _powernorm_pass(x2d, gsum, gbcast, scale_row, bias_row, *, compute_y,
                    compute_var, n_groups, gs_eps, tile_rows, tile_cols,
                    num_tc, vmem_bytes):
    N, C = x2d.shape
    nr = pl.cdiv(N, tile_rows)
    nc = C // tile_cols
    mask_rows = (N % tile_rows) != 0

    if compute_var:
        # Shard rows across TensorCores only when the channel axis cannot
        # provide the parallelism (var is emitted as per-outer-block partials).
        n_outer = num_tc if (num_tc > 1 and nc < num_tc
                             and nr % num_tc == 0) else 1
    else:
        n_outer = nr                  # rows fully independent -> all parallel
    n_inner = nr // n_outer

    kernel = functools.partial(
        _powernorm_kernel,
        gs_eps=gs_eps, inv_n=1.0 / N, n_rows=N, tile_rows=tile_rows,
        n_inner=n_inner, mask_rows=mask_rows, n_groups=n_groups,
        compute_y=compute_y, compute_var=compute_var)

    x_spec = pl.BlockSpec((tile_rows, tile_cols),
                          lambda ro, ci, ri: (ro * n_inner + ri, ci))
    row_spec = pl.BlockSpec((1, tile_cols), lambda ro, ci, ri: (0, ci))

    in_specs = [x_spec,
                pl.BlockSpec((tile_cols, n_groups), lambda ro, ci, ri: (0, 0))]
    inputs = [x2d, gsum]
    if n_groups > 1:
        in_specs.append(
            pl.BlockSpec((n_groups, tile_cols), lambda ro, ci, ri: (0, 0)))
        inputs.append(gbcast)
    if compute_y:
        in_specs += [row_spec, row_spec]
        inputs += [scale_row, bias_row]

    out_shape = []
    out_specs = []
    if compute_y:
        out_shape.append(jax.ShapeDtypeStruct((N, C), x2d.dtype))
        out_specs.append(x_spec)
    if compute_var:
        out_shape.append(jax.ShapeDtypeStruct((n_outer, 1, C), jnp.float32))
        out_specs.append(
            pl.BlockSpec((None, 1, tile_cols), lambda ro, ci, ri: (ro, 0, ci)))

    # VMEM budget from the actual resident buffers (double-buffered x / y
    # tiles) plus headroom for the f32 in-register temporaries, clamped per
    # generation (<=75% of 128 MiB on v5e/v6e, <=75% of 64 MiB on v7x).
    io_bytes = 2 * tile_rows * tile_cols * x2d.dtype.itemsize
    io_bytes *= 2 if compute_y else 1
    temps = 6 * tile_rows * tile_cols * 4
    need = io_bytes + temps + (4 << 20)
    cap = int(0.75 * vmem_bytes)
    vmem_limit = int(min(cap, max(need, min(16 << 20, cap))))

    outs = pl.pallas_call(
        kernel,
        out_shape=tuple(out_shape),
        grid=(n_outer, nc, n_inner),
        in_specs=in_specs,
        out_specs=tuple(out_specs),
        compiler_params=pltpu.CompilerParams(
            dimension_semantics=("parallel", "parallel", "arbitrary"),
            vmem_limit_bytes=vmem_limit),
    )(*inputs)

    if not isinstance(outs, (tuple, list)):
        outs = (outs,)
    outs = list(outs)
    y2d = outs.pop(0) if compute_y else None
    var = None
    if compute_var:
        var = jnp.sum(outs.pop(0), axis=0)        # (1, C); partials already /N
    return y2d, var


# ----------------------------------------------------------------------------
# Module forward
# ----------------------------------------------------------------------------
def mask_power_norm_fwd(x, weight, bias, running_phi, iters, *,
                        eps=1e-5, afwd=0.9, abkw=0.9, warmup_iters=10000,
                        group_num=1, training=True, gs_eps=1e-5,
                        tile_rows=None, tile_cols=None):
    """Forward of MaskPowerNorm for input (T, B, C) (or (B, C)), pad_mask=None.

    Returns (output, new_running_phi (same shape as running_phi), new_iters).
    `abkw` is accepted for API parity but only used by the (unimplemented)
    backward.
    """
    shaped_input = (x.ndim == 2)
    if shaped_input:
        x = x[None]
    T, B, C = x.shape
    assert C % group_num == 0, "num_features must be divisible by group_num"
    N = T * B
    x2d = x.reshape(N, C)

    vmem_bytes, num_tc = _device_info()
    cg = C // group_num
    tc = tile_cols if tile_cols is not None else _choose_col_tile(
        C, cg, num_tc=num_tc, vmem_bytes=vmem_bytes)
    assert C % tc == 0 and tc % cg == 0, "channel tile must align with groups"
    tn = tile_rows if tile_rows is not None else _choose_row_tile(
        N, tc, x2d.dtype.itemsize, vmem_bytes=vmem_bytes)
    tn = min(tn, N)

    # Tile-local group reduce / broadcast matrices (identical for every tile).
    n_groups = tc // cg
    gidx = jnp.arange(tc, dtype=jnp.int32) // cg
    onehot = (gidx[:, None] == jnp.arange(n_groups, dtype=jnp.int32)[None, :])
    gsum = (onehot.astype(jnp.float32) / cg).astype(jnp.bfloat16)   # (tc, G)
    gbcast = onehot.T.astype(jnp.float32)                           # (G, tc)

    phi_row = running_phi.reshape(1, C).astype(jnp.float32)
    w_row = weight.reshape(1, C).astype(jnp.float32)
    b_row = bias.reshape(1, C).astype(jnp.float32)

    # TODO(synk): host-sync on iters; see module docstring.
    current_iter = int(iters) + 1 if training else int(iters)
    use_var = bool(training and (current_iter <= warmup_iters))

    pass_kw = dict(n_groups=n_groups, gs_eps=gs_eps, tile_rows=tn,
                   tile_cols=tc, num_tc=num_tc, vmem_bytes=vmem_bytes)

    if training and use_var:
        # Warmup: pass 0 accumulates var, pass 1 streams y (2 reads + 1 write).
        # TODO(synk): for f32 inputs, cache gs (bf16) to an HBM scratch in
        #             pass 0 to skip the group-scaling recompute in pass 1.
        _, var = _powernorm_pass(x2d, gsum, gbcast, None, None,
                                 compute_y=False, compute_var=True, **pass_kw)
        scale = w_row * lax.rsqrt(var + eps)
        y2d, _ = _powernorm_pass(x2d, gsum, gbcast, scale, b_row,
                                 compute_y=True, compute_var=False, **pass_kw)
    elif training:
        # Post-warmup: y depends only on running_phi -> single fused pass that
        # also accumulates var for the phi EMA (1 read + 1 write).
        scale = w_row * lax.rsqrt(phi_row + eps)
        y2d, var = _powernorm_pass(x2d, gsum, gbcast, scale, b_row,
                                   compute_y=True, compute_var=True, **pass_kw)
    else:
        # Eval: single pass, no statistics needed.
        scale = w_row * lax.rsqrt(phi_row + eps)
        y2d, _ = _powernorm_pass(x2d, gsum, gbcast, scale, b_row,
                                 compute_y=True, compute_var=False, **pass_kw)
        var = None

    # Buffer updates (tiny (1, C) math, plain JAX).  Matches the torch code:
    # during warmup BOTH the cumulative-average and the EMA update run.
    new_phi = phi_row
    if training:
        if current_iter < warmup_iters:
            new_phi = (new_phi * (current_iter - 1) / current_iter
                       + var / current_iter)
        new_phi = afwd * new_phi + (1.0 - afwd) * var
    new_phi = new_phi.reshape(running_phi.shape).astype(running_phi.dtype)

    y = y2d.reshape(T, B, C)
    if shaped_input:
        y = y[0]
    return y, new_phi, current_iter


# ----------------------------------------------------------------------------
# Pure-JAX reference (mirrors the PyTorch module, pad_mask=None)
# ----------------------------------------------------------------------------
def _reference_forward(x, weight, bias, running_phi, iters, *, eps, afwd,
                       warmup_iters, group_num, training, gs_eps=1e-5):
    T, B, C = x.shape
    cg = C // group_num
    xf = x.astype(jnp.float32)
    m2 = jnp.mean((xf * xf).reshape(T, B, group_num, cg), axis=3, keepdims=True)
    m2 = jnp.broadcast_to(m2, (T, B, group_num, cg)).reshape(T, B, C)
    gs = xf / jnp.sqrt(m2 + gs_eps)
    phi = running_phi.reshape(1, C).astype(jnp.float32)
    w = weight.reshape(1, 1, C).astype(jnp.float32)
    b = bias.reshape(1, 1, C).astype(jnp.float32)
    if training:
        cur = int(iters) + 1
        var = jnp.mean((gs * gs).reshape(-1, C), axis=0, keepdims=True)
        denom = var if cur <= warmup_iters else phi
        y = w * (gs / jnp.sqrt(denom.reshape(1, 1, C) + eps)) + b
        if cur < warmup_iters:
            phi = phi * (cur - 1) / cur + var / cur
        phi = afwd * phi + (1.0 - afwd) * var
        return y, phi, cur
    y = w * (gs / jnp.sqrt(phi.reshape(1, 1, C) + eps)) + b
    return y, phi, int(iters)


def _check(name, x, weight, bias, phi, iters, *, group_num, training,
           warmup_iters=10000, tile_rows=None, tile_cols=None,
           atol=1e-2, rtol=1e-2):
    # bf16-class tolerances: the per-group second moment is reduced with a
    # bf16 MXU matmul (per the perf review), losing ~3 decimal digits.
    y, new_phi, _ = mask_power_norm_fwd(
        x, weight, bias, phi, iters, eps=1e-5, afwd=0.9, abkw=0.9,
        warmup_iters=warmup_iters, group_num=group_num, training=training,
        tile_rows=tile_rows, tile_cols=tile_cols)
    y = jax.block_until_ready(y)
    y_ref, phi_ref, _ = _reference_forward(
        x, weight, bias, phi, iters, eps=1e-5, afwd=0.9,
        warmup_iters=warmup_iters, group_num=group_num, training=training)
    y_err = jnp.max(jnp.abs(y.astype(jnp.float32) - y_ref))
    p_err = jnp.max(jnp.abs(new_phi.reshape(1, -1).astype(jnp.float32) - phi_ref))
    assert bool(jnp.allclose(y.astype(jnp.float32), y_ref,
                             atol=atol, rtol=rtol)), \
        f"{name}: output mismatch (max abs err {y_err})"
    assert bool(jnp.allclose(new_phi.reshape(1, -1).astype(jnp.float32),
                             phi_ref, atol=atol, rtol=rtol)), \
        f"{name}: running_phi mismatch (max abs err {p_err})"


if __name__ == "__main__":
    key = jax.random.PRNGKey(0)
    k1, k2, k3 = jax.random.split(key, 3)

    # Small config matching MaskPowerNorm defaults (seq=8, batch=2, C=32).
    T, B, C = 8, 2, 32
    x = jax.random.normal(k1, (T, B, C), jnp.float32)
    w = jnp.ones((C,), jnp.float32)                # nn.Parameter(ones(C))
    b = jnp.zeros((C,), jnp.float32)               # nn.Parameter(zeros(C))
    phi = jnp.ones((1, C, 1, 1), jnp.float32)      # running_phi buffer

    _check("warmup_gn1", x, w, b, phi, 0, group_num=1, training=True)
    _check("warmup_gn4", x, w, b, phi, 0, group_num=4, training=True)
    _check("postwarmup_fused", x, w, b, phi, 20000, group_num=1, training=True)
    _check("eval", x, w, b, phi, 20000, group_num=1, training=False)

    # bf16 I/O (reductions stay f32 in-kernel).
    _check("warmup_bf16", x.astype(jnp.bfloat16), w, b, phi, 0,
           group_num=1, training=True, atol=3e-2, rtol=3e-2)

    # Larger config forcing real tiling: row grid + cross-tile var accumulator
    # with a partial last row tile, a channel-block axis, and the thin-matmul
    # group-mean path (G = 2 groups per 128-wide channel tile).
    T2, B2, C2 = 115, 8, 256
    x2 = jax.random.normal(k2, (T2, B2, C2), jnp.float32)
    w2 = jax.random.normal(k3, (C2,), jnp.float32) * 0.1 + 1.0
    b2 = jnp.full((C2,), 0.05, jnp.float32)
    phi2 = jnp.ones((1, C2, 1, 1), jnp.float32)
    _check("tiled_warmup_gn4", x2, w2, b2, phi2, 0, group_num=4, training=True,
           tile_rows=128, tile_cols=128)
    _check("tiled_postwarmup_gn4", x2, w2, b2, phi2, 5, group_num=4,
           training=True, warmup_iters=3, tile_rows=128, tile_cols=128)
    # Auto tile policy (generation-aware full-width / split choice).
    _check("auto_postwarmup_gn4", x2, w2, b2, phi2, 5, group_num=4,
           training=True, warmup_iters=3)

    print("KERNEL_OK")
</pallas_src>

<mosaic_0001>
module attributes {stable_mosaic.version = 11 : i64} {
  func.func @_powernorm_kernel(%arg0: i32, %arg1: i32, %arg2: i32, %arg3: memref<16x32xf32, #tpu.memory_space<vmem>>, %arg4: memref<32x1xbf16, #tpu.memory_space<vmem>>, %arg5: memref<1x1x32xf32, #tpu.memory_space<vmem>>) attributes {dimension_semantics = [#tpu.dimension_semantics<parallel>, #tpu.dimension_semantics<parallel>, #tpu.dimension_semantics<arbitrary>], iteration_bounds = array<i64: 1, 1, 1>, scalar_prefetch = 0 : i64, scratch_operands = 0 : i64, tpu.core_type = #tpu.core_type<tc>, window_params = [{transform_indices = @transform_0, window_bounds = array<i64: 16, 32>}, {pipeline_mode = #tpu.pipeline_mode<synchronous>, transform_indices = @transform_1, window_bounds = array<i64: 32, 1>}, {transform_indices = @transform_2, window_bounds = array<i64: 1, 1, 32>}]} {
    %c0 = arith.constant 0 : index
    %c0_0 = arith.constant 0 : index
    %0 = vector.load %arg3[%c0, %c0_0] : memref<16x32xf32, #tpu.memory_space<vmem>>, vector<16x32xf32>
    %1 = arith.mulf %0, %0 : vector<16x32xf32>
    %2 = arith.truncf %1 : vector<16x32xf32> to vector<16x32xbf16>
    %c0_1 = arith.constant 0 : index
    %c0_2 = arith.constant 0 : index
    %3 = vector.load %arg4[%c0_1, %c0_2] : memref<32x1xbf16, #tpu.memory_space<vmem>>, vector<32x1xbf16>
    %cst = arith.constant dense<0.000000e+00> : vector<16x1xf32>
    %4 = tpu.matmul %2, %3, %cst {dimension_numbers = #tpu.dot_dimension_numbers<[1], [0], [0], [1], [0, 0, 1, 1], [], []>} : vector<16x32xbf16>, vector<32x1xbf16>, vector<16x1xf32> -> vector<16x1xf32>
    %cst_3 = arith.constant 9.99999974E-6 : f32
    %5 = vector.broadcast %cst_3 : f32 to vector<16x1xf32>
    %6 = arith.addf %4, %5 : vector<16x1xf32>
    %7 = math.rsqrt %6 : vector<16x1xf32>
    %8 = vector.broadcast %7 : vector<16x1xf32> to vector<16x32xf32>
    %9 = arith.mulf %0, %8 : vector<16x32xf32>
    %c0_i32 = arith.constant 0 : i32
    %10 = arith.cmpi eq, %arg2, %c0_i32 : i32
    %11 = arith.extui %10 : i1 to i32
    %c0_i32_4 = arith.constant 0 : i32
    %12 = arith.cmpi ne, %11, %c0_i32_4 : i32
    scf.if %12 {
      %cst_14 = arith.constant 0.000000e+00 : f32
      %25 = vector.broadcast %cst_14 : f32 to vector<1x32xf32>
      %c0_15 = arith.constant 0 : index
      %c0_16 = arith.constant 0 : index
      %c0_17 = arith.constant 0 : index
      %26 = vector.load %arg5[%c0_15, %c0_16, %c0_17] : memref<1x1x32xf32, #tpu.memory_space<vmem>>, vector<1x1x32xf32>
      %27 = vector.shape_cast %26 : vector<1x1x32xf32> to vector<1x32xf32>
      %28 = vector.shape_cast %25 : vector<1x32xf32> to vector<1x1x32xf32>
      tpu.vector_store %arg5[%c0_15, %c0_16, %c0_17], %28 {strides = array<i32>} : memref<1x1x32xf32, #tpu.memory_space<vmem>>, vector<1x1x32xf32>,
    } else {
    }
    %13 = arith.mulf %9, %9 : vector<16x32xf32>
    %c0_5 = arith.constant 0 : index
    %c0_6 = arith.constant 0 : index
    %c0_7 = arith.constant 0 : index
    %14 = vector.load %arg5[%c0_5, %c0_6, %c0_7] : memref<1x1x32xf32, #tpu.memory_space<vmem>>, vector<1x1x32xf32>
    %15 = vector.shape_cast %14 : vector<1x1x32xf32> to vector<1x32xf32>
    %cst_8 = arith.constant dense<0.000000e+00> : vector<32xf32>
    %16 = vector.multi_reduction <add>, %13, %cst_8 [0] : vector<16x32xf32> to vector<32xf32>
    %17 = vector.shape_cast %16 : vector<32xf32> to vector<1x32xf32>
    %18 = arith.addf %15, %17 : vector<1x32xf32>
    %c0_9 = arith.constant 0 : index
    %c0_10 = arith.constant 0 : index
    %c0_11 = arith.constant 0 : index
    %19 = vector.load %arg5[%c0_9, %c0_10, %c0_11] : memref<1x1x32xf32, #tpu.memory_space<vmem>>, vector<1x1x32xf32>
    %20 = vector.shape_cast %19 : vector<1x1x32xf32> to vector<1x32xf32>
    %21 = vector.shape_cast %18 : vector<1x32xf32> to vector<1x1x32xf32>
    tpu.vector_store %arg5[%c0_9, %c0_10, %c0_11], %21 {strides = array<i32>} : memref<1x1x32xf32, #tpu.memory_space<vmem>>, vector<1x1x32xf32>,
    %c0_i32_12 = arith.constant 0 : i32
    %22 = arith.cmpi eq, %arg2, %c0_i32_12 : i32
    %23 = arith.extui %22 : i1 to i32
    %c0_i32_13 = arith.constant 0 : i32
    %24 = arith.cmpi ne, %23, %c0_i32_13 : i32
    scf.if %24 {
      %c0_14 = arith.constant 0 : index
      %c0_15 = arith.constant 0 : index
      %c0_16 = arith.constant 0 : index
      %25 = vector.load %arg5[%c0_14, %c0_15, %c0_16] : memref<1x1x32xf32, #tpu.memory_space<vmem>>, vector<1x1x32xf32>
      %26 = vector.shape_cast %25 : vector<1x1x32xf32> to vector<1x32xf32>
      %cst_17 = arith.constant 6.250000e-02 : f32
      %27 = vector.broadcast %cst_17 : f32 to vector<1x32xf32>
      %28 = arith.mulf %26, %27 : vector<1x32xf32>
      %c0_18 = arith.constant 0 : index
      %c0_19 = arith.constant 0 : index
      %c0_20 = arith.constant 0 : index
      %29 = vector.load %arg5[%c0_18, %c0_19, %c0_20] : memref<1x1x32xf32, #tpu.memory_space<vmem>>, vector<1x1x32xf32>
      %30 = vector.shape_cast %29 : vector<1x1x32xf32> to vector<1x32xf32>
      %31 = vector.shape_cast %28 : vector<1x32xf32> to vector<1x1x32xf32>
      tpu.vector_store %arg5[%c0_18, %c0_19, %c0_20], %31 {strides = array<i32>} : memref<1x1x32xf32, #tpu.memory_space<vmem>>, vector<1x1x32xf32>,
    } else {
    }
    return
  }
  func.func @transform_0(%arg0: i32, %arg1: i32, %arg2: i32) -> (i32, i32) {
    %c1_i32 = arith.constant 1 : i32
    %0 = arith.muli %arg0, %c1_i32 : i32
    %1 = arith.addi %0, %arg2 : i32
    %c0_i32 = arith.constant 0 : i32
    return %1, %arg1 : i32, i32
  }
  func.func @transform_1(%arg0: i32, %arg1: i32, %arg2: i32) -> (i32, i32) {
    %c0_i32 = arith.constant 0 : i32
    %c0_i32_0 = arith.constant 0 : i32
    %c0_i32_1 = arith.constant 0 : i32
    return %c0_i32, %c0_i32_0 : i32, i32
  }
  func.func @transform_2(%arg0: i32, %arg1: i32, %arg2: i32) -> (i32, i32, i32) {
    %c0_i32 = arith.constant 0 : i32
    %c0_i32_0 = arith.constant 0 : i32
    return %arg0, %c0_i32, %arg1 : i32, i32, i32
  }
}

</mosaic_0001>

<llo_original>
// kernel: tpu_custom_call.1
$region0: #{tpu_custom_call.1}
  #allocation0 [shape = 'u32[]', space=smem, size = 0x4, offset = 0x4, fixed_abs, tag = 'smem constant byte address 0x4 - core index']
  #allocation1 [shape = 'u32[144,128]{1,0:T(1,128)}', space=vmem, size = 0x12000, scoped, tag = 'internal scratch']
  %s0 = inlined_call_operand.vmem [shape: f32[16,32], index: 0, kind: input, shape index: {}]
  %s1 = inlined_call_operand.vmem [shape: bf16[32,1], index: 1, kind: input, shape index: {}]
  %s2 = inlined_call_operand.hbm [shape: f32[1,1,32], index: 2, kind: output, shape index: {}]
  %s3 = sld [smem:[#allocation0]]
  $region26: #{tpu_custom_call.1} parent=0
    _
  %s5 = ssub.s32 1, %s3
  %s6 = scalar_select 0, %s5, %s3
  $region1: #{tpu_custom_call.1} parent=0
    #allocation2 [shape = 'u8[512]{0}', space=vmem, size = 0x400, scoped, tag = 'output window, operand 0, single buffered']
    #allocation3 [shape = 's32[1]{0}', space=sflag, size = 0x4, scoped, tag = 'scoped memory for tpu_custom_call.1']
    %7 = vsyncpa [#allocation3], 0
    // Predicated region
    $region2: #{tpu_custom_call.1} parent=1 // pred_check
      _
    $region3: #{tpu_custom_call.1} parent=1 // pred_check_branch
      %9 = sbr.rel (0) target = $region5
    $region4: #{tpu_custom_call.1} parent=1 // pred_region
      %s10 = sadd.s32 0, 0
      %s11 = smul.u32 2, %s10
      %p12 = scmp.lt.s32.totalorder %s11, 1
      %s13 = scalar_select %p12, %s11, 1
      %s14 = smul.addr %s13, 8
      %s15 = scalar_lea.vmem %s0, %s14
      %s16 = sadd.s32 0, 0
      %s17 = smul.u32 2, %s16
    $region5: #{tpu_custom_call.1} parent=1 // pred_fallthru
      _
    // Predicated region
    $region6: #{tpu_custom_call.1} parent=1 // pred_check
      _
    $region7: #{tpu_custom_call.1} parent=1 // pred_check_branch
      %19 = sbr.rel (0) target = $region9
    $region8: #{tpu_custom_call.1} parent=1 // pred_region
      _
    $region9: #{tpu_custom_call.1} parent=1 // pred_fallthru
      _
    %s20 = sadd.s32 0, 0
    %s21 = smul.u32 2, %s20
    %p22 = scmp.lt.s32.totalorder %s21, 1
    %s23 = scalar_select %p22, %s21, 1
    %s24 = smul.addr %s23, 8
    %s25 = scalar_lea.vmem %s0, %s24
    %s26 = sadd.s32 0, 0
    %s27 = smul.u32 2, %s26
    %p28 = scmp.lt.s32.totalorder %s27, 1
    %s29 = scalar_select %p28, %s27, 1
    %s30 = smul.addr %s29, 8
    %s31 = scalar_lea.vmem %s0, %s30
    %s32 = sadd.s32 0, 0
    %s33 = smul.u32 2, %s32
    %v35 = vld [vmem:[%s31] sm:$0xff]
    %v36 = vld [vmem:[%s31 + $0x8] sm:$0xff]
    %v37 = vmul.f32 %v35, %v35
    %v38 = vmul.f32 %v36, %v36
    %v39 = vpack.c.bf16 %v38, %v37
    %v40 = vld [vmem:[%s1] sm:$0xf]
    %v41 = vld [vmem:[%s1 + $0x4] sm:$0xf]
    %v42 = vld [vmem:[%s1 + $0x8] sm:$0xf]
    %v43 = vld [vmem:[%s1 + $0xc] sm:$0xf]
    %v48 = vunpack.c.l.b16 %v40
    %v49 = vunpack.c.l.b16 %v41
    %v50 = vunpack.c.l.b16 %v42
    %v51 = vunpack.c.l.b16 %v43
    %v52 = vpack.c.b16 %v49, %v48
    %v53 = vpack.c.b16 %v51, %v50
    %vm56 = vcmask 261120
    %v58 = vsel %vm56, %v39, 0
    %60 = vmatprep.subr.bf16.mxu0 0
    %61 = vmatpush1.bf16.msra.mxu0 %v52
    %62 = vmatprep.subr.bf16.mxu0 0
    %63 = vmatpush1.bf16.msra.mxu0 %v53
    %64 = vmatprep.subr.bf16.mxu0 0
    %65 = vmatpush1.bf16.msra.mxu0 0
    %66 = vmatprep.subr.bf16.mxu0 0
    %67 = vmatpush1.bf16.msra.mxu0 0
    %68 = vmatprep.subr.bf16.mxu0 0
    %69 = vmatpush1.bf16.msra.mxu0 0
    %70 = vmatprep.subr.bf16.mxu0 0
    %71 = vmatpush1.bf16.msra.mxu0 0
    %72 = vmatprep.subr.bf16.mxu0 0
    %73 = vmatpush1.bf16.msra.mxu0 0
    %74 = vmatprep.subr.bf16.mxu0 0
    %75 = vmatpush1.bf16.msra.mxu0 0
    %76 = vmatprep.subr.bf16.mxu0 0
    %77 = vmatpush1.bf16.msra.mxu0 0
    %78 = vmatprep.subr.bf16.mxu0 0
    %79 = vmatpush1.bf16.msra.mxu0 0
    %80 = vmatprep.subr.bf16.mxu0 0
    %81 = vmatpush1.bf16.msra.mxu0 0
    %82 = vmatprep.subr.bf16.mxu0 0
    %83 = vmatpush1.bf16.msra.mxu0 0
    %84 = vmatprep.subr.bf16.mxu0 0
    %85 = vmatpush1.bf16.msra.mxu0 0
    %86 = vmatprep.subr.bf16.mxu0 0
    %87 = vmatpush1.bf16.msra.mxu0 0
    %88 = vmatprep.subr.bf16.mxu0 0
    %89 = vmatpush1.bf16.msra.mxu0 0
    %90 = vmatprep.subr.bf16.mxu0 0
    %91 = vmatpush1.bf16.msra.mxu0 0
    %92 = vmatprep.mubr.bf16.mxu0 0
    %93 = vmatmul.mubr.bf16.gmra.mrb[0].mxu0 %v58
    %v94 = vpop.f32.mrb[0].mxu0
    %v95 = vadd.f32 1e-05, %v94
    %v96 = vpop.f32.mrb[0].mxu0
    %v97 = vpop.f32.mrb[0].mxu0
    %v98 = vadd.f32 1e-05, %v97
    %v99 = vpop.f32.mrb[0].mxu0
    %100 = vdwg.mxu0
    %v101 = vrsqrt.pop %v95
    %v102 = vrsqrt.pop %v98
    %104 = vset.pattern.permute.xlu0 0
    %105 = vperm.xlu0 %104, %v101
    %v106 = vpop.permute.xlu0 %105
    %109 = vset.pattern.permute.xlu0 0
    %110 = vperm.xlu0 %109, %v102
    %v111 = vpop.permute.xlu0 %110
    %v113 = vmul.f32 %v35, %v106
    %v114 = vmul.f32 %v36, %v111
    %p115 = scmp.eq.s32.totalorder 0, 0
    // Predicated region
    $region10: #{tpu_custom_call.1} parent=1 // pred_check
      %p116 = pneg %p115
    $region11: #{tpu_custom_call.1} parent=1 // pred_check_branch
      %118 = sbr.rel (%p116) target = $region13
    $region12: #{tpu_custom_call.1} parent=1 // pred_region
      %vm119 = vcmask 253952
      %120 = vst.msk [vmem:[#allocation2] sm:$0x1] %vm119, 0.0
    $region13: #{tpu_custom_call.1} parent=1 // pred_fallthru
      _
    %v121 = vmul.f32 %v113, %v113
    %v122 = vmul.f32 %v114, %v114
    %v123 = vld [vmem:[#allocation2] sm:$0x1]
    %v124 = vsel %vm56, %v121, 0.0
    %v125 = vsel %vm56, %v122, 0.0
    %v126 = vadd.f32 %v124, %v125
    %v127 = vrot.slane %v126, 4
    %v128 = vadd.f32 %v126, %v127
    %v129 = vrot.slane %v128, 2
    %v130 = vadd.f32 %v128, %v129
    %v131 = vrot.slane %v130, 1
    %v132 = vadd.f32 %v130, %v131
    %v133 = vadd.f32 %v123, %v132
    %vm134 = vcmask 253952
    %135 = vst.msk [vmem:[#allocation2] sm:$0x1] %vm134, %v133
    // Predicated region
    $region14: #{tpu_custom_call.1} parent=1 // pred_check
      %p136 = pneg %p115
    $region15: #{tpu_custom_call.1} parent=1 // pred_check_branch
      %138 = sbr.rel (%p136) target = $region17
    $region16: #{tpu_custom_call.1} parent=1 // pred_region
      %v139 = vld [vmem:[#allocation2] sm:$0x1]
      %v140 = vmul.f32 %v139, 0.0625
      %141 = vst.msk [vmem:[#allocation2] sm:$0x1] %vm134, %v140
    $region17: #{tpu_custom_call.1} parent=1 // pred_fallthru
      _
    // Predicated region
    $region18: #{tpu_custom_call.1} parent=1 // pred_check
      _
    $region19: #{tpu_custom_call.1} parent=1 // pred_check_branch
      %143 = sbr.rel (0) target = $region21
    $region20: #{tpu_custom_call.1} parent=1 // pred_region
      %s145 = ssub.s32 16, 16
      %146 = vsyncadd [#allocation3], %s145
      %s148 = sshll.u32 [#allocation2], 4
      %s149 = int_to_ptr.vmem [resolvable:$true] %s148
      %151 = dma.vmem_to_hbm [thread:$0]  %s149, 16, %s2, [#allocation3]
    $region21: #{tpu_custom_call.1} parent=1 // pred_fallthru
      _
    // Predicated region
    $region22: #{tpu_custom_call.1} parent=1 // pred_check
      _
    $region23: #{tpu_custom_call.1} parent=1 // pred_check_branch
      %153 = sbr.rel (0) target = $region25
    $region24: #{tpu_custom_call.1} parent=1 // pred_region
      %154 = dma.done [#allocation3], 16
    $region25: #{tpu_custom_call.1} parent=1 // pred_fallthru
      _
    %155 = vsyncpa [#allocation3], 1

</llo_original>
